<compile_context>
chip_gen: v5e
topology: v5e:2x2
jax: 0.10.0
libtpu: 0.0.40
codegen_flags: <defaults>
</compile_context>

<pallas_src>
import numpy as np
import jax
import jax.numpy as jnp
from jax.experimental import pallas as pl
from jax.experimental.pallas import tpu as pltpu


# ----------------------------------------------------------------------------
# Interpolation matrices (PyTorch trilinear, align_corners=False, half-pixel)
# ----------------------------------------------------------------------------

def _half_pixel_interp_matrix(in_size, out_size):
    """(out_size, in_size) matrix matching F.interpolate(mode='linear',
    align_corners=False) for 1 spatial axis (rows sum to 1)."""
    m = np.zeros((out_size, in_size), dtype=np.float64)
    if in_size == 1:
        m[:, 0] = 1.0
        return m.astype(np.float32)
    scale = in_size / out_size
    for o in range(out_size):
        src = max((o + 0.5) * scale - 0.5, 0.0)
        i0 = min(int(np.floor(src)), in_size - 1)
        i1 = min(i0 + 1, in_size - 1)
        lam = src - i0
        m[o, i0] += 1.0 - lam
        m[o, i1] += lam
    return m.astype(np.float32)


# ----------------------------------------------------------------------------
# Pallas kernel: fused (1x1x1 conv at coarse res) + (x2 trilinear upsample)
# ----------------------------------------------------------------------------

def _patch_expanding_kernel(x_prev_ref, x_cur_ref, x_next_ref,
                            w_ref, b_ref, m_ref, o_ref):
    # One grid step = (batch b, coarse depth i): produces the two fine-depth
    # output slabs 2i and 2i+1.
    xm = x_prev_ref[0, :, 0, 0, :]      # (C, H*W)  coarse slab i-1 (clamped)
    xc = x_cur_ref[0, :, 0, 0, :]       # (C, H*W)  coarse slab i
    xp = x_next_ref[0, :, 0, 0, :]      # (C, H*W)  coarse slab i+1 (clamped)

    # Depth interpolation, scale 2, half-pixel (align_corners=False):
    #   fine depth 2i   = 0.25 * slab[i-1] + 0.75 * slab[i]
    #   fine depth 2i+1 = 0.75 * slab[i]   + 0.25 * slab[i+1]
    # Edge replication is already provided by the clamped index maps.
    z0 = 0.25 * xm + 0.75 * xc
    z1 = 0.75 * xc + 0.25 * xp

    # 1x1x1 conv applied at the COARSE resolution (commutes with the interp).
    w = w_ref[...]                      # (C2, C)
    y0 = jnp.dot(w, z0, preferred_element_type=jnp.float32)   # (C2, H*W)
    y1 = jnp.dot(w, z1, preferred_element_type=jnp.float32)

    # Fused H+W interpolation + even/odd interleave: one lane-dense MXU matmul
    # with the precomputed kron(Mh, Mw)^T matrix.  Bias is added at the end;
    # this is exact because every interpolation row sums to 1.
    m = m_ref[...]                      # (H*W, 2H*2W)
    bias = b_ref[...]                   # (C2, 1)
    o0 = jnp.dot(y0, m, preferred_element_type=jnp.float32) + bias
    o1 = jnp.dot(y1, m, preferred_element_type=jnp.float32) + bias

    o_ref[0, :, 0, 0, :] = o0.astype(o_ref.dtype)
    o_ref[0, :, 0, 1, :] = o1.astype(o_ref.dtype)


def patch_expanding_forward(x, weight, bias):
    """Patch_Expanding.forward.

    x:      (B, C, D, H, W)   NCDHW
    weight: (C//2, C)         1x1x1 Conv3d weight (squeezed)
    bias:   (C//2,)           Conv3d bias
    returns (B, C//2, 2D, 2H, 2W)
    """
    B, C, D, H, W = x.shape
    C2 = weight.shape[0]
    HW = H * W
    OHW = 4 * HW

    # Combined H+W interpolation/interleave matrix, (H*W, 2H*2W).
    mh = _half_pixel_interp_matrix(H, 2 * H)
    mw = _half_pixel_interp_matrix(W, 2 * W)
    m_hw = jnp.asarray(np.kron(mh, mw).T, dtype=x.dtype)

    # Metadata-only reshapes; the dummy size-1 axis keeps the depth-blocked
    # axis out of the (sublane, lane) positions so every block's last two dims
    # equal the full array dims.
    x_f = x.reshape(B, C, D, 1, HW)
    w2 = weight.astype(x.dtype)
    b2 = bias.reshape(C2, 1).astype(x.dtype)

    x_block = (1, C, 1, 1, HW)

    def x_prev_map(b, i):
        return (b, 0, jnp.maximum(i - 1, 0), 0, 0)

    def x_cur_map(b, i):
        return (b, 0, i, 0, 0)

    def x_next_map(b, i):
        return (b, 0, jnp.minimum(i + 1, D - 1), 0, 0)

    def const_map(b, i):
        return (0, 0)

    def out_map(b, i):
        return (b, 0, i, 0, 0)

    # Advisory cost estimate (2 conv + 2 interp matmuls per grid step).
    flops = B * D * (4 * C2 * C * HW + 4 * C2 * HW * OHW)
    bytes_accessed = 4 * (3 * B * D * C * HW + B * C2 * D * 2 * OHW
                          + C2 * C + C2 + HW * OHW)

    out = pl.pallas_call(
        _patch_expanding_kernel,
        out_shape=jax.ShapeDtypeStruct((B, C2, D, 2, OHW), x.dtype),
        grid=(B, D),
        in_specs=[
            pl.BlockSpec(x_block, x_prev_map),
            pl.BlockSpec(x_block, x_cur_map),
            pl.BlockSpec(x_block, x_next_map),
            pl.BlockSpec((C2, C), const_map),     # conv weight (resident)
            pl.BlockSpec((C2, 1), const_map),     # conv bias   (resident)
            pl.BlockSpec((HW, OHW), const_map),   # kron(Mh,Mw)^T (resident)
        ],
        out_specs=pl.BlockSpec((1, C2, 1, 2, OHW), out_map),
        compiler_params=pltpu.CompilerParams(
            dimension_semantics=("parallel", "parallel")),
        cost_estimate=pl.CostEstimate(
            flops=flops, transcendentals=0, bytes_accessed=bytes_accessed),
    )(x_f, x_f, x_f, w2, b2, m_hw)

    # (B, C2, D, 2, 2H*2W) -> (B, C2, 2D, 2H, 2W): pure metadata reshape
    # (the coarse-depth / depth-parity pair flattens exactly to fine depth).
    return out.reshape(B, C2, 2 * D, 2 * H, 2 * W)


# ----------------------------------------------------------------------------
# Pure-JAX reference (direct transcription of the PyTorch forward order)
# ----------------------------------------------------------------------------

def patch_expanding_reference(x, weight, bias):
    B, C, D, H, W = x.shape
    md = jnp.asarray(_half_pixel_interp_matrix(D, 2 * D), x.dtype)
    mh = jnp.asarray(_half_pixel_interp_matrix(H, 2 * H), x.dtype)
    mw = jnp.asarray(_half_pixel_interp_matrix(W, 2 * W), x.dtype)
    xu = jnp.einsum('pd,bcdhw->bcphw', md, x)
    xu = jnp.einsum('qh,bcdhw->bcdqw', mh, xu)
    xu = jnp.einsum('rw,bcdhw->bcdhr', mw, xu)
    y = jnp.einsum('oc,bcdhw->bodhw', weight, xu)
    return y + bias.reshape(1, -1, 1, 1, 1)


# ----------------------------------------------------------------------------
# Driver
# ----------------------------------------------------------------------------

if __name__ == "__main__":
    key = jax.random.PRNGKey(0)
    B, dim = 2, 8                 # Patch_Expanding(dim=8): Conv3d(8 -> 4, k=1)
    D, H, W = 4, 8, 8             # coarse spatial -> output (8, 16, 16)

    kx, kw, kb = jax.random.split(key, 3)
    x = jax.random.normal(kx, (B, dim, D, H, W), jnp.float32)
    bound = 1.0 / float(np.sqrt(dim))
    weight = jax.random.uniform(kw, (dim // 2, dim), jnp.float32, -bound, bound)
    bias = jax.random.uniform(kb, (dim // 2,), jnp.float32, -bound, bound)

    out = jax.jit(patch_expanding_forward)(x, weight, bias)
    out = jax.block_until_ready(out)

    assert out.shape == (B, dim // 2, 2 * D, 2 * H, 2 * W), out.shape
    assert bool(jnp.all(jnp.isfinite(out)))

    ref = patch_expanding_reference(x, weight, bias)
    max_err = float(jnp.max(jnp.abs(out - ref)))
    assert max_err < 1e-4, f"max abs err {max_err}"

    print("KERNEL_OK")
</pallas_src>

<mosaic_0001>
module attributes {stable_mosaic.version = 11 : i64} {
  func.func @_patch_expanding_kernel(%arg0: i32, %arg1: i32, %arg2: memref<1x8x1x1x64xf32, #tpu.memory_space<vmem>>, %arg3: memref<1x8x1x1x64xf32, #tpu.memory_space<vmem>>, %arg4: memref<1x8x1x1x64xf32, #tpu.memory_space<vmem>>, %arg5: memref<4x8xf32, #tpu.memory_space<vmem>>, %arg6: memref<4x1xf32, #tpu.memory_space<vmem>>, %arg7: memref<64x256xf32, #tpu.memory_space<vmem>>, %arg8: memref<1x4x1x2x256xf32, #tpu.memory_space<vmem>>) attributes {dimension_semantics = [#tpu.dimension_semantics<parallel>, #tpu.dimension_semantics<parallel>], iteration_bounds = array<i64: 2, 4>, scalar_prefetch = 0 : i64, scratch_operands = 0 : i64, tpu.core_type = #tpu.core_type<tc>, window_params = [{transform_indices = @transform_0, window_bounds = array<i64: 1, 8, 1, 1, 64>}, {transform_indices = @transform_1, window_bounds = array<i64: 1, 8, 1, 1, 64>}, {transform_indices = @transform_2, window_bounds = array<i64: 1, 8, 1, 1, 64>}, {pipeline_mode = #tpu.pipeline_mode<synchronous>, transform_indices = @transform_3, window_bounds = array<i64: 4, 8>}, {pipeline_mode = #tpu.pipeline_mode<synchronous>, transform_indices = @transform_4, window_bounds = array<i64: 4, 1>}, {pipeline_mode = #tpu.pipeline_mode<synchronous>, transform_indices = @transform_5, window_bounds = array<i64: 64, 256>}, {transform_indices = @transform_6, window_bounds = array<i64: 1, 4, 1, 2, 256>}]} {
    %c0 = arith.constant 0 : index
    %c0_0 = arith.constant 0 : index
    %c0_1 = arith.constant 0 : index
    %c0_2 = arith.constant 0 : index
    %c0_3 = arith.constant 0 : index
    %0 = vector.load %arg2[%c0, %c0_0, %c0_1, %c0_2, %c0_3] : memref<1x8x1x1x64xf32, #tpu.memory_space<vmem>>, vector<1x8x1x1x64xf32>
    %1 = vector.shape_cast %0 : vector<1x8x1x1x64xf32> to vector<8x64xf32>
    %c0_4 = arith.constant 0 : index
    %c0_5 = arith.constant 0 : index
    %c0_6 = arith.constant 0 : index
    %c0_7 = arith.constant 0 : index
    %c0_8 = arith.constant 0 : index
    %2 = vector.load %arg3[%c0_4, %c0_5, %c0_6, %c0_7, %c0_8] : memref<1x8x1x1x64xf32, #tpu.memory_space<vmem>>, vector<1x8x1x1x64xf32>
    %3 = vector.shape_cast %2 : vector<1x8x1x1x64xf32> to vector<8x64xf32>
    %c0_9 = arith.constant 0 : index
    %c0_10 = arith.constant 0 : index
    %c0_11 = arith.constant 0 : index
    %c0_12 = arith.constant 0 : index
    %c0_13 = arith.constant 0 : index
    %4 = vector.load %arg4[%c0_9, %c0_10, %c0_11, %c0_12, %c0_13] : memref<1x8x1x1x64xf32, #tpu.memory_space<vmem>>, vector<1x8x1x1x64xf32>
    %5 = vector.shape_cast %4 : vector<1x8x1x1x64xf32> to vector<8x64xf32>
    %cst = arith.constant 2.500000e-01 : f32
    %6 = vector.broadcast %cst : f32 to vector<8x64xf32>
    %7 = arith.mulf %6, %1 : vector<8x64xf32>
    %cst_14 = arith.constant 7.500000e-01 : f32
    %8 = vector.broadcast %cst_14 : f32 to vector<8x64xf32>
    %9 = arith.mulf %8, %3 : vector<8x64xf32>
    %10 = arith.addf %7, %9 : vector<8x64xf32>
    %cst_15 = arith.constant 7.500000e-01 : f32
    %11 = vector.broadcast %cst_15 : f32 to vector<8x64xf32>
    %12 = arith.mulf %11, %3 : vector<8x64xf32>
    %cst_16 = arith.constant 2.500000e-01 : f32
    %13 = vector.broadcast %cst_16 : f32 to vector<8x64xf32>
    %14 = arith.mulf %13, %5 : vector<8x64xf32>
    %15 = arith.addf %12, %14 : vector<8x64xf32>
    %c0_17 = arith.constant 0 : index
    %c0_18 = arith.constant 0 : index
    %16 = vector.load %arg5[%c0_17, %c0_18] : memref<4x8xf32, #tpu.memory_space<vmem>>, vector<4x8xf32>
    %cst_19 = arith.constant dense<0.000000e+00> : vector<4x64xf32>
    %17 = tpu.matmul %16, %10, %cst_19 {dimension_numbers = #tpu.dot_dimension_numbers<[1], [0], [0], [1], [0, 0, 1, 1], [], []>} : vector<4x8xf32>, vector<8x64xf32>, vector<4x64xf32> -> vector<4x64xf32>
    %cst_20 = arith.constant dense<0.000000e+00> : vector<4x64xf32>
    %18 = tpu.matmul %16, %15, %cst_20 {dimension_numbers = #tpu.dot_dimension_numbers<[1], [0], [0], [1], [0, 0, 1, 1], [], []>} : vector<4x8xf32>, vector<8x64xf32>, vector<4x64xf32> -> vector<4x64xf32>
    %c0_21 = arith.constant 0 : index
    %c0_22 = arith.constant 0 : index
    %19 = vector.load %arg7[%c0_21, %c0_22] : memref<64x256xf32, #tpu.memory_space<vmem>>, vector<64x256xf32>
    %c0_23 = arith.constant 0 : index
    %c0_24 = arith.constant 0 : index
    %20 = vector.load %arg6[%c0_23, %c0_24] : memref<4x1xf32, #tpu.memory_space<vmem>>, vector<4x1xf32>
    %cst_25 = arith.constant dense<0.000000e+00> : vector<4x256xf32>
    %21 = tpu.matmul %17, %19, %cst_25 {dimension_numbers = #tpu.dot_dimension_numbers<[1], [0], [0], [1], [0, 0, 1, 1], [], []>} : vector<4x64xf32>, vector<64x256xf32>, vector<4x256xf32> -> vector<4x256xf32>
    %22 = vector.broadcast %20 : vector<4x1xf32> to vector<4x256xf32>
    %23 = arith.addf %21, %22 : vector<4x256xf32>
    %cst_26 = arith.constant dense<0.000000e+00> : vector<4x256xf32>
    %24 = tpu.matmul %18, %19, %cst_26 {dimension_numbers = #tpu.dot_dimension_numbers<[1], [0], [0], [1], [0, 0, 1, 1], [], []>} : vector<4x64xf32>, vector<64x256xf32>, vector<4x256xf32> -> vector<4x256xf32>
    %25 = vector.broadcast %20 : vector<4x1xf32> to vector<4x256xf32>
    %26 = arith.addf %24, %25 : vector<4x256xf32>
    %c0_27 = arith.constant 0 : index
    %c0_28 = arith.constant 0 : index
    %c0_29 = arith.constant 0 : index
    %c0_30 = arith.constant 0 : index
    %c0_31 = arith.constant 0 : index
    %27 = vector.load %arg8[%c0_27, %c0_28, %c0_29, %c0_30, %c0_31] : memref<1x4x1x2x256xf32, #tpu.memory_space<vmem>>, vector<1x4x1x1x256xf32>
    %28 = vector.shape_cast %27 : vector<1x4x1x1x256xf32> to vector<4x256xf32>
    %29 = vector.shape_cast %23 : vector<4x256xf32> to vector<1x4x1x1x256xf32>
    tpu.vector_store %arg8[%c0_27, %c0_28, %c0_29, %c0_30, %c0_31], %29 {strides = array<i32>} : memref<1x4x1x2x256xf32, #tpu.memory_space<vmem>>, vector<1x4x1x1x256xf32>,
    %c0_32 = arith.constant 0 : index
    %c0_33 = arith.constant 0 : index
    %c0_34 = arith.constant 0 : index
    %c1 = arith.constant 1 : index
    %c0_35 = arith.constant 0 : index
    %30 = vector.load %arg8[%c0_32, %c0_33, %c0_34, %c1, %c0_35] : memref<1x4x1x2x256xf32, #tpu.memory_space<vmem>>, vector<1x4x1x1x256xf32>
    %31 = vector.shape_cast %30 : vector<1x4x1x1x256xf32> to vector<4x256xf32>
    %32 = vector.shape_cast %26 : vector<4x256xf32> to vector<1x4x1x1x256xf32>
    tpu.vector_store %arg8[%c0_32, %c0_33, %c0_34, %c1, %c0_35], %32 {strides = array<i32>} : memref<1x4x1x2x256xf32, #tpu.memory_space<vmem>>, vector<1x4x1x1x256xf32>,
    return
  }
  func.func @transform_0(%arg0: i32, %arg1: i32) -> (i32, i32, i32, i32, i32) {
    %c1_i32 = arith.constant 1 : i32
    %0 = arith.subi %arg1, %c1_i32 : i32
    %c0_i32 = arith.constant 0 : i32
    %1 = arith.maxsi %0, %c0_i32 : i32
    %c0_i32_0 = arith.constant 0 : i32
    %c0_i32_1 = arith.constant 0 : i32
    %c0_i32_2 = arith.constant 0 : i32
    %c0_i32_3 = arith.constant 0 : i32
    return %arg0, %c0_i32_0, %1, %c0_i32_1, %c0_i32_2 : i32, i32, i32, i32, i32
  }
  func.func @transform_1(%arg0: i32, %arg1: i32) -> (i32, i32, i32, i32, i32) {
    %c0_i32 = arith.constant 0 : i32
    %c0_i32_0 = arith.constant 0 : i32
    %c0_i32_1 = arith.constant 0 : i32
    %c0_i32_2 = arith.constant 0 : i32
    return %arg0, %c0_i32, %arg1, %c0_i32_0, %c0_i32_1 : i32, i32, i32, i32, i32
  }
  func.func @transform_2(%arg0: i32, %arg1: i32) -> (i32, i32, i32, i32, i32) {
    %c1_i32 = arith.constant 1 : i32
    %0 = arith.addi %arg1, %c1_i32 : i32
    %c3_i32 = arith.constant 3 : i32
    %1 = arith.minsi %0, %c3_i32 : i32
    %c0_i32 = arith.constant 0 : i32
    %c0_i32_0 = arith.constant 0 : i32
    %c0_i32_1 = arith.constant 0 : i32
    %c0_i32_2 = arith.constant 0 : i32
    return %arg0, %c0_i32, %1, %c0_i32_0, %c0_i32_1 : i32, i32, i32, i32, i32
  }
  func.func @transform_3(%arg0: i32, %arg1: i32) -> (i32, i32) {
    %c0_i32 = arith.constant 0 : i32
    %c0_i32_0 = arith.constant 0 : i32
    %c0_i32_1 = arith.constant 0 : i32
    return %c0_i32, %c0_i32_0 : i32, i32
  }
  func.func @transform_4(%arg0: i32, %arg1: i32) -> (i32, i32) {
    %c0_i32 = arith.constant 0 : i32
    %c0_i32_0 = arith.constant 0 : i32
    %c0_i32_1 = arith.constant 0 : i32
    return %c0_i32, %c0_i32_0 : i32, i32
  }
  func.func @transform_5(%arg0: i32, %arg1: i32) -> (i32, i32) {
    %c0_i32 = arith.constant 0 : i32
    %c0_i32_0 = arith.constant 0 : i32
    %c0_i32_1 = arith.constant 0 : i32
    return %c0_i32, %c0_i32_0 : i32, i32
  }
  func.func @transform_6(%arg0: i32, %arg1: i32) -> (i32, i32, i32, i32, i32) {
    %c0_i32 = arith.constant 0 : i32
    %c0_i32_0 = arith.constant 0 : i32
    %c0_i32_1 = arith.constant 0 : i32
    %c0_i32_2 = arith.constant 0 : i32
    return %arg0, %c0_i32, %arg1, %c0_i32_0, %c0_i32_1 : i32, i32, i32, i32, i32
  }
}

</mosaic_0001>

<llo_original>
// kernel: patch_expanding_forward.1
$region0: #{patch_expanding_forward.1}
  #allocation0 [shape = 'u32[]', space=smem, size = 0x4, offset = 0x4, fixed_abs, tag = 'smem constant byte address 0x4 - core index']
  #allocation1 [shape = 'u32[72,128]{1,0:T(1,128)}', space=vmem, size = 0x9000, scoped, tag = 'internal scratch']
  %s0 = inlined_call_operand.vmem [shape: f32[2,8,4,1,64], index: 0, kind: input, shape index: {}, may-alias: {0,1,2}]
  %s1 = inlined_call_operand.vmem [shape: f32[2,8,4,1,64], index: 1, kind: input, shape index: {}, may-alias: {0,1,2}]
  %s2 = inlined_call_operand.vmem [shape: f32[2,8,4,1,64], index: 2, kind: input, shape index: {}, may-alias: {0,1,2}]
  %s3 = inlined_call_operand.vmem [shape: f32[4,8], index: 3, kind: input, shape index: {}]
  %s4 = inlined_call_operand.vmem [shape: f32[4,1], index: 4, kind: input, shape index: {}]
  %s5 = inlined_call_operand.vmem [shape: f32[64,256], index: 5, kind: input, shape index: {}]
  %s6 = inlined_call_operand.vmem [shape: f32[2,4,4,2,256], index: 6, kind: output, shape index: {}]
  %s7 = sld [smem:[#allocation0]]
  $region217: #{patch_expanding_forward.1} parent=0
    _
  %s9 = ssub.s32 1, %s7
  %s10 = scalar_select 0, %s9, %s7
  $region1: #{patch_expanding_forward.1} parent=0
    #allocation2 [shape = 'u8[8192]{0}', space=vmem, size = 0x2000, scoped, tag = 'input window, operand 0']
    #allocation3 [shape = 'u8[8192]{0}', space=vmem, size = 0x2000, scoped, tag = 'input window, operand 1']
    #allocation4 [shape = 'u8[8192]{0}', space=vmem, size = 0x2000, scoped, tag = 'input window, operand 2']
    #allocation5 [shape = 'u8[16384]{0}', space=vmem, size = 0x4000, scoped, tag = 'output window, operand 0']
    loop: start=0, step=1, limit=10
    $region2: #{patch_expanding_forward.1} parent=1 // loop_pre_header
      _
    $region3: #{patch_expanding_forward.1} parent=1 // loop_header
      %s12 = sphi 0, %s16
      %p13 = scmp.ge.s32.totalorder %s12, 10
      %s19 = sphi 0, %s31
      %s20 = sphi 0, %s27
      %s21 = sphi 0, %s19
      %s22 = sphi 0, %s20
      %s23 = sphi 0, %s21
      %s24 = sphi 0, %s22
      %s42 = sphi 0, %s44
      %s45 = sphi 0, %s42
      %s46 = sphi 0, %s45
      %s62 = sphi 0, %s46
      %s70 = sphi 0, %s72
      %s73 = sphi 0, %s70
      %s74 = sphi 0, %s73
      %s90 = sphi 0, %s74
      %s104 = sphi 0, %s106
      %s107 = sphi 0, %s104
      %s108 = sphi 0, %s107
      %s124 = sphi 0, %s108
      %s128 = sphi 0, %s128
      %s130 = sphi 0, %s128
      %s131 = sphi 0, %s130
      %s145 = sphi 0, %s131
      %s149 = sphi 0, %s149
      %s151 = sphi 0, %s149
      %s152 = sphi 0, %s151
      %s166 = sphi 0, %s152
      %s170 = sphi 0, %s170
      %s172 = sphi 0, %s170
      %s173 = sphi 0, %s172
      %s187 = sphi 0, %s173
      %s195 = sphi 0, %s197
      %s198 = sphi 0, %s195
      %s199 = sphi 0, %s198
      %s215 = sphi 0, %s199
    $region4: #{patch_expanding_forward.1} parent=1 // loop_header_branch
      %15 = sbr.rel (%p13) target = $region8
    $region5: #{patch_expanding_forward.1} parent=1 // loop_body
      %s17 = ssub.s32 %s12, 1
      %s18 = ssub.s32 %s12, 2
      %s25 = sadd.s32 1, %s20
      %p26 = scmp.ge.s32.totalorder %s25, 4
      %s27 = scalar_select %p26, 0, %s25
      %s28 = sadd.s32 1, %s19
      %s29 = scalar_select %p26, %s28, %s19
      %p30 = scmp.ge.s32.totalorder %s29, 2
      %s31 = scalar_select %p30, 0, %s29
      %s32 = ssub.s32 %s20, 1
      %p33 = scmp.gt.s32.totalorder %s32, 0
      %s34 = scalar_select %p33, %s32, 0
      %s35 = ssub.s32 %s27, 1
      %p36 = scmp.gt.s32.totalorder %s35, 0
      %s37 = scalar_select %p36, %s35, 0
      %s38 = ssub.s32 %s19, %s31
      %s39 = ssub.s32 %s34, %s37
      %s40 = sor.u32 %s38, %s39
      %p41 = scmp.eq.s32.totalorder %s40, 0
      %s43 = sadd.s32 %s42, 1
      %s44 = scalar_select %p41, %s42, %s43
      %p47 = pneg %p41
      %p48 = scmp.eq.s32.totalorder %s12, 7
      %p49 = por %p47, %p48
      %p50 = scmp.ne.s32.totalorder %s42, %s45
      %p51 = scmp.eq.s32.totalorder %s12, 0
      %p52 = por %p50, %p51
      %p53 = scmp.ne.s32.totalorder %s42, %s45
      %p54 = scmp.eq.s32.totalorder %s17, 7
      %p55 = por %p53, %p54
      %p56 = scmp.ne.s32.totalorder %s45, %s46
      %p57 = scmp.eq.s32.totalorder %s17, 0
      %p58 = por %p56, %p57
      %p59 = scmp.ne.s32.totalorder %s45, %s46
      %p60 = scmp.eq.s32.totalorder %s18, 7
      %p61 = por %p59, %p60
      %p63 = scmp.ne.s32.totalorder %s46, %s62
      %p64 = scmp.eq.s32.totalorder %s18, 0
      %p65 = por %p63, %p64
      %s66 = ssub.s32 %s19, %s31
      %s67 = ssub.s32 %s20, %s27
      %s68 = sor.u32 %s66, %s67
      %p69 = scmp.eq.s32.totalorder %s68, 0
      %s71 = sadd.s32 %s70, 1
      %s72 = scalar_select %p69, %s70, %s71
      %p75 = pneg %p69
      %p76 = scmp.eq.s32.totalorder %s12, 7
      %p77 = por %p75, %p76
      %p78 = scmp.ne.s32.totalorder %s70, %s73
      %p79 = scmp.eq.s32.totalorder %s12, 0
      %p80 = por %p78, %p79
      %p81 = scmp.ne.s32.totalorder %s70, %s73
      %p82 = scmp.eq.s32.totalorder %s17, 7
      %p83 = por %p81, %p82
      %p84 = scmp.ne.s32.totalorder %s73, %s74
      %p85 = scmp.eq.s32.totalorder %s17, 0
      %p86 = por %p84, %p85
      %p87 = scmp.ne.s32.totalorder %s73, %s74
      %p88 = scmp.eq.s32.totalorder %s18, 7
      %p89 = por %p87, %p88
      %p91 = scmp.ne.s32.totalorder %s74, %s90
      %p92 = scmp.eq.s32.totalorder %s18, 0
      %p93 = por %p91, %p92
      %s94 = sadd.s32 %s20, 1
      %p95 = scmp.lt.s32.totalorder %s94, 3
      %s96 = scalar_select %p95, %s94, 3
      %s97 = sadd.s32 %s27, 1
      %p98 = scmp.lt.s32.totalorder %s97, 3
      %s99 = scalar_select %p98, %s97, 3
      %s100 = ssub.s32 %s19, %s31
      %s101 = ssub.s32 %s96, %s99
      %s102 = sor.u32 %s100, %s101
      %p103 = scmp.eq.s32.totalorder %s102, 0
      %s105 = sadd.s32 %s104, 1
      %s106 = scalar_select %p103, %s104, %s105
      %p109 = pneg %p103
      %p110 = scmp.eq.s32.totalorder %s12, 7
      %p111 = por %p109, %p110
      %p112 = scmp.ne.s32.totalorder %s104, %s107
      %p113 = scmp.eq.s32.totalorder %s12, 0
      %p114 = por %p112, %p113
      %p115 = scmp.ne.s32.totalorder %s104, %s107
      %p116 = scmp.eq.s32.totalorder %s17, 7
      %p117 = por %p115, %p116
      %p118 = scmp.ne.s32.totalorder %s107, %s108
      %p119 = scmp.eq.s32.totalorder %s17, 0
      %p120 = por %p118, %p119
      %p121 = scmp.ne.s32.totalorder %s107, %s108
      %p122 = scmp.eq.s32.totalorder %s18, 7
      %p123 = por %p121, %p122
      %p125 = scmp.ne.s32.totalorder %s108, %s124
      %p126 = scmp.eq.s32.totalorder %s18, 0
      %p127 = por %p125, %p126
      %s129 = sadd.s32 %s128, 1
      %p132 = scmp.eq.s32.totalorder %s12, 7
      %p133 = scmp.ne.s32.totalorder %s128, %s130
      %p134 = scmp.eq.s32.totalorder %s12, 0
      %p135 = por %p133, %p134
      %p136 = scmp.ne.s32.totalorder %s128, %s130
      %p137 = scmp.eq.s32.totalorder %s17, 7
      %p138 = por %p136, %p137
      %p139 = scmp.ne.s32.totalorder %s130, %s131
      %p140 = scmp.eq.s32.totalorder %s17, 0
      %p141 = por %p139, %p140
      %p142 = scmp.ne.s32.totalorder %s130, %s131
      %p143 = scmp.eq.s32.totalorder %s18, 7
      %p144 = por %p142, %p143
      %p146 = scmp.ne.s32.totalorder %s131, %s145
      %p147 = scmp.eq.s32.totalorder %s18, 0
      %p148 = por %p146, %p147
      %s150 = sadd.s32 %s149, 1
      %p153 = scmp.eq.s32.totalorder %s12, 7
      %p154 = scmp.ne.s32.totalorder %s149, %s151
      %p155 = scmp.eq.s32.totalorder %s12, 0
      %p156 = por %p154, %p155
      %p157 = scmp.ne.s32.totalorder %s149, %s151
      %p158 = scmp.eq.s32.totalorder %s17, 7
      %p159 = por %p157, %p158
      %p160 = scmp.ne.s32.totalorder %s151, %s152
      %p161 = scmp.eq.s32.totalorder %s17, 0
      %p162 = por %p160, %p161
      %p163 = scmp.ne.s32.totalorder %s151, %s152
      %p164 = scmp.eq.s32.totalorder %s18, 7
      %p165 = por %p163, %p164
      %p167 = scmp.ne.s32.totalorder %s152, %s166
      %p168 = scmp.eq.s32.totalorder %s18, 0
      %p169 = por %p167, %p168
      %s171 = sadd.s32 %s170, 1
      %p174 = scmp.eq.s32.totalorder %s12, 7
      %p175 = scmp.ne.s32.totalorder %s170, %s172
      %p176 = scmp.eq.s32.totalorder %s12, 0
      %p177 = por %p175, %p176
      %p178 = scmp.ne.s32.totalorder %s170, %s172
      %p179 = scmp.eq.s32.totalorder %s17, 7
      %p180 = por %p178, %p179
      %p181 = scmp.ne.s32.totalorder %s172, %s173
      %p182 = scmp.eq.s32.totalorder %s17, 0
      %p183 = por %p181, %p182
      %p184 = scmp.ne.s32.totalorder %s172, %s173
      %p185 = scmp.eq.s32.totalorder %s18, 7
      %p186 = por %p184, %p185
      %p188 = scmp.ne.s32.totalorder %s173, %s187
      %p189 = scmp.eq.s32.totalorder %s18, 0
      %p190 = por %p188, %p189
      %s191 = ssub.s32 %s19, %s31
      %s192 = ssub.s32 %s20, %s27
      %s193 = sor.u32 %s191, %s192
      %p194 = scmp.eq.s32.totalorder %s193, 0
      %s196 = sadd.s32 %s195, 1
      %s197 = scalar_select %p194, %s195, %s196
      %p200 = pneg %p194
      %p201 = scmp.eq.s32.totalorder %s12, 7
      %p202 = por %p200, %p201
      %p203 = scmp.ne.s32.totalorder %s195, %s198
      %p204 = scmp.eq.s32.totalorder %s12, 0
      %p205 = por %p203, %p204
      %p206 = scmp.ne.s32.totalorder %s195, %s198
      %p207 = scmp.eq.s32.totalorder %s17, 7
      %p208 = por %p206, %p207
      %p209 = scmp.ne.s32.totalorder %s198, %s199
      %p210 = scmp.eq.s32.totalorder %s17, 0
      %p211 = por %p209, %p210
      %p212 = scmp.ne.s32.totalorder %s198, %s199
      %p213 = scmp.eq.s32.totalorder %s18, 7
      %p214 = por %p212, %p213
      %p216 = scmp.ne.s32.totalorder %s199, %s215
      %p217 = scmp.eq.s32.totalorder %s18, 0
      %p218 = por %p216, %p217
      %p219 = scmp.le.s32.totalorder 1, %s12
      %p220 = scmp.lt.s32.totalorder %s12, 9
      %p221 = pnand %p219, %p220
      %p222 = pneg %p221
      // Predicated region
      $region9: #{patch_expanding_forward.1} parent=5 // pred_check
        _
      $region10: #{patch_expanding_forward.1} parent=5 // pred_check_branch
        %224 = sbr.rel (%p221) target = $region12
      $region11: #{patch_expanding_forward.1} parent=5 // pred_region
        %s225 = ssub.s32 %s12, 1
        // Predicated region
        $region13: #{patch_expanding_forward.1} parent=11 // pred_check
          %p226 = pneg %p141
        $region14: #{patch_expanding_forward.1} parent=11 // pred_check_branch
          %228 = sbr.rel (%p226) target = $region16
        $region15: #{patch_expanding_forward.1} parent=11 // pred_region
          _
        $region16: #{patch_expanding_forward.1} parent=11 // pred_fallthru
          _
        // Predicated region
        $region17: #{patch_expanding_forward.1} parent=11 // pred_check
          %p229 = pneg %p162
        $region18: #{patch_expanding_forward.1} parent=11 // pred_check_branch
          %231 = sbr.rel (%p229) target = $region20
        $region19: #{patch_expanding_forward.1} parent=11 // pred_region
          _
        $region20: #{patch_expanding_forward.1} parent=11 // pred_fallthru
          _
        // Predicated region
        $region21: #{patch_expanding_forward.1} parent=11 // pred_check
          %p232 = pneg %p183
        $region22: #{patch_expanding_forward.1} parent=11 // pred_check_branch
          %234 = sbr.rel (%p232) target = $region24
        $region23: #{patch_expanding_forward.1} parent=11 // pred_region
          _
        $region24: #{patch_expanding_forward.1} parent=11 // pred_fallthru
          _
      $region12: #{patch_expanding_forward.1} parent=5 // pred_fallthru
        _
      %p235 = scmp.lt.s32.totalorder %s12, 8
      // Predicated region
      $region25: #{patch_expanding_forward.1} parent=5 // pred_check
        %p236 = pneg %p235
      $region26: #{patch_expanding_forward.1} parent=5 // pred_check_branch
        %238 = sbr.rel (%p236) target = $region28
      $region27: #{patch_expanding_forward.1} parent=5 // pred_region
        // Predicated region
        $region29: #{patch_expanding_forward.1} parent=27 // pred_check
          %p239 = pneg %p52
        $region30: #{patch_expanding_forward.1} parent=27 // pred_check_branch
          %241 = sbr.rel (%p239) target = $region32
        $region31: #{patch_expanding_forward.1} parent=27 // pred_region
          %s242 = sand.u32 %s42, 1
          %s243 = sand.u32 %s42, 1
          %s244 = smul.addr %s243, 8
          %s245 = scalar_lea.vmem [#allocation2], %s244
          %s246 = ssub.s32 %s20, 1
          %p247 = scmp.gt.s32.totalorder %s246, 0
          %s248 = scalar_select %p247, %s246, 0
          %s249 = smul.addr %s19, 32
          %s250 = sadd.s32 %s248, %s249
          %s251 = scalar_lea.vmem %s0, %s250
          // Predicated region
          $region33: #{patch_expanding_forward.1} parent=31 // pred_check
            _
          $region34: #{patch_expanding_forward.1} parent=31 // pred_check_branch
            %253 = sbr.rel (0) target = $region36
          $region35: #{patch_expanding_forward.1} parent=31 // pred_region
            // Predicated region
            $region37: #{patch_expanding_forward.1} parent=35 // pred_check
              _
            $region38: #{patch_expanding_forward.1} parent=35 // pred_check_branch
              %255 = sbr.rel target = $region40
            $region39: #{patch_expanding_forward.1} parent=35 // pred_region
              // Predicated region
              $region52: #{patch_expanding_forward.1} parent=39 // pred_check
                _
              $region53: #{patch_expanding_forward.1} parent=39 // pred_check_branch
                %285 = sbr.rel (0) target = $region55
              $region54: #{patch_expanding_forward.1} parent=39 // pred_region
                loop: start=0, step=1, limit=1
                $region56: #{patch_expanding_forward.1} parent=54 // loop_pre_header
                  _
                $region57: #{patch_expanding_forward.1} parent=54 // loop_header
                  %s287 = sphi 0, %s291
                  %p288 = scmp.ge.s32.totalorder %s287, 1
                  %s292 = sphi %s251, %s251
                  %s293 = sphi %s245, %s245
                $region58: #{patch_expanding_forward.1} parent=54 // loop_header_branch
                  %290 = sbr.rel (%p288) target = $region62
                $region59: #{patch_expanding_forward.1} parent=54 // loop_body
                  _
                $region60: #{patch_expanding_forward.1} parent=54 // loop_footer
                  %s291 = sadd.s32 1, %s287
                $region61: #{patch_expanding_forward.1} parent=54 // loop_footer_branch
                  %286 = sbr.rel target = $region57
                $region62: #{patch_expanding_forward.1} parent=54 // loop_exit
                  _
                %s295 = ssub.s32 2, 1
                loop: start=0, step=1, limit=1
                $region63: #{patch_expanding_forward.1} parent=54 // loop_pre_header
                  _
                $region64: #{patch_expanding_forward.1} parent=54 // loop_header
                  %s297 = sphi 0, %s301
                  %p298 = scmp.ge.s32.totalorder %s297, 1
                  %s302 = sphi %s251, %s251
                  %s303 = sphi %s245, %s245
                $region65: #{patch_expanding_forward.1} parent=54 // loop_header_branch
                  %300 = sbr.rel (%p298) target = $region69
                $region66: #{patch_expanding_forward.1} parent=54 // loop_body
                  %v304 = vld [vmem:[%s302] sm:%s295]
                  %305 = vst [vmem:[%s303] sm:%s295] %v304
                  %v306 = vld [vmem:[%s302 + $0x4] sm:%s295]
                  %307 = vst [vmem:[%s303 + $0x1] sm:%s295] %v306
                  %v308 = vld [vmem:[%s302 + $0x8] sm:%s295]
                  %309 = vst [vmem:[%s303 + $0x2] sm:%s295] %v308
                  %v310 = vld [vmem:[%s302 + $0xc] sm:%s295]
                  %311 = vst [vmem:[%s303 + $0x3] sm:%s295] %v310
                  %v312 = vld [vmem:[%s302 + $0x10] sm:%s295]
                  %313 = vst [vmem:[%s303 + $0x4] sm:%s295] %v312
                  %v314 = vld [vmem:[%s302 + $0x14] sm:%s295]
                  %315 = vst [vmem:[%s303 + $0x5] sm:%s295] %v314
                  %v316 = vld [vmem:[%s302 + $0x18] sm:%s295]
                  %317 = vst [vmem:[%s303 + $0x6] sm:%s295] %v316
                  %v318 = vld [vmem:[%s302 + $0x1c] sm:%s295]
                  %319 = vst [vmem:[%s303 + $0x7] sm:%s295] %v318
                $region67: #{patch_expanding_forward.1} parent=54 // loop_footer
                  %s301 = sadd.s32 1, %s297
                $region68: #{patch_expanding_forward.1} parent=54 // loop_footer_branch
                  %296 = sbr.rel target = $region64
                $region69: #{patch_expanding_forward.1} parent=54 // loop_exit
                  _
              $region55: #{patch_expanding_forward.1} parent=39 // pred_fallthru
                _
            $region40: #{patch_expanding_forward.1} parent=35 // pred_fallthru
              _
            // Predicated region
            $region41: #{patch_expanding_forward.1} parent=35 // pred_check
              _
            $region42: #{patch_expanding_forward.1} parent=35 // pred_check_branch
              %257 = sbr.rel (0) target = $region44
            $region43: #{patch_expanding_forward.1} parent=35 // pred_region
              %s259 = ssub.s32 2, 1
              loop: start=0, step=1, limit=1
              $region45: #{patch_expanding_forward.1} parent=43 // loop_pre_header
                _
              $region46: #{patch_expanding_forward.1} parent=43 // loop_header
                %s261 = sphi 0, %s265
                %p262 = scmp.ge.s32.totalorder %s261, 1
                %s266 = sphi %s251, %s251
                %s267 = sphi %s245, %s245
              $region47: #{patch_expanding_forward.1} parent=43 // loop_header_branch
                %264 = sbr.rel (%p262) target = $region51
              $region48: #{patch_expanding_forward.1} parent=43 // loop_body
                %v268 = vld [vmem:[%s266] sm:%s259]
                %269 = vst [vmem:[%s267] sm:%s259] %v268
                %v270 = vld [vmem:[%s266 + $0x4] sm:%s259]
                %271 = vst [vmem:[%s267 + $0x1] sm:%s259] %v270
                %v272 = vld [vmem:[%s266 + $0x8] sm:%s259]
                %273 = vst [vmem:[%s267 + $0x2] sm:%s259] %v272
                %v274 = vld [vmem:[%s266 + $0xc] sm:%s259]
                %275 = vst [vmem:[%s267 + $0x3] sm:%s259] %v274
                %v276 = vld [vmem:[%s266 + $0x10] sm:%s259]
                %277 = vst [vmem:[%s267 + $0x4] sm:%s259] %v276
                %v278 = vld [vmem:[%s266 + $0x14] sm:%s259]
                %279 = vst [vmem:[%s267 + $0x5] sm:%s259] %v278
                %v280 = vld [vmem:[%s266 + $0x18] sm:%s259]
                %281 = vst [vmem:[%s267 + $0x6] sm:%s259] %v280
                %v282 = vld [vmem:[%s266 + $0x1c] sm:%s259]
                %283 = vst [vmem:[%s267 + $0x7] sm:%s259] %v282
              $region49: #{patch_expanding_forward.1} parent=43 // loop_footer
                %s265 = sadd.s32 1, %s261
              $region50: #{patch_expanding_forward.1} parent=43 // loop_footer_branch
                %260 = sbr.rel target = $region46
              $region51: #{patch_expanding_forward.1} parent=43 // loop_exit
                _
            $region44: #{patch_expanding_forward.1} parent=35 // pred_fallthru
              _
          $region36: #{patch_expanding_forward.1} parent=31 // pred_fallthru
            _
          %320 = vnop
        $region32: #{patch_expanding_forward.1} parent=27 // pred_fallthru
          _
        // Predicated region
        $region70: #{patch_expanding_forward.1} parent=27 // pred_check
          %p321 = pneg %p80
        $region71: #{patch_expanding_forward.1} parent=27 // pred_check_branch
          %323 = sbr.rel (%p321) target = $region73
        $region72: #{patch_expanding_forward.1} parent=27 // pred_region
          %s324 = sand.u32 %s70, 1
          %s325 = sand.u32 %s70, 1
          %s326 = smul.addr %s325, 8
          %s327 = scalar_lea.vmem [#allocation3], %s326
          %s328 = smul.addr %s19, 32
          %s329 = sadd.s32 %s20, %s328
          %s330 = scalar_lea.vmem %s1, %s329
          // Predicated region
          $region74: #{patch_expanding_forward.1} parent=72 // pred_check
            _
          $region75: #{patch_expanding_forward.1} parent=72 // pred_check_branch
            %332 = sbr.rel (0) target = $region77
          $region76: #{patch_expanding_forward.1} parent=72 // pred_region
            // Predicated region
            $region78: #{patch_expanding_forward.1} parent=76 // pred_check
              _
            $region79: #{patch_expanding_forward.1} parent=76 // pred_check_branch
              %334 = sbr.rel target = $region81
            $region80: #{patch_expanding_forward.1} parent=76 // pred_region
              // Predicated region
              $region93: #{patch_expanding_forward.1} parent=80 // pred_check
                _
              $region94: #{patch_expanding_forward.1} parent=80 // pred_check_branch
                %364 = sbr.rel (0) target = $region96
              $region95: #{patch_expanding_forward.1} parent=80 // pred_region
                loop: start=0, step=1, limit=1
                $region97: #{patch_expanding_forward.1} parent=95 // loop_pre_header
                  _
                $region98: #{patch_expanding_forward.1} parent=95 // loop_header
                  %s366 = sphi 0, %s370
                  %p367 = scmp.ge.s32.totalorder %s366, 1
                  %s371 = sphi %s330, %s330
                  %s372 = sphi %s327, %s327
                $region99: #{patch_expanding_forward.1} parent=95 // loop_header_branch
                  %369 = sbr.rel (%p367) target = $region103
                $region100: #{patch_expanding_forward.1} parent=95 // loop_body
                  _
                $region101: #{patch_expanding_forward.1} parent=95 // loop_footer
                  %s370 = sadd.s32 1, %s366
                $region102: #{patch_expanding_forward.1} parent=95 // loop_footer_branch
                  %365 = sbr.rel target = $region98
                $region103: #{patch_expanding_forward.1} parent=95 // loop_exit
                  _
                %s374 = ssub.s32 2, 1
                loop: start=0, step=1, limit=1
                $region104: #{patch_expanding_forward.1} parent=95 // loop_pre_header
                  _
                $region105: #{patch_expanding_forward.1} parent=95 // loop_header
                  %s376 = sphi 0, %s380
                  %p377 = scmp.ge.s32.totalorder %s376, 1
                  %s381 = sphi %s330, %s330
                  %s382 = sphi %s327, %s327
                $region106: #{patch_expanding_forward.1} parent=95 // loop_header_branch
                  %379 = sbr.rel (%p377) target = $region110
                $region107: #{patch_expanding_forward.1} parent=95 // loop_body
                  %v383 = vld [vmem:[%s381] sm:%s374]
                  %384 = vst [vmem:[%s382] sm:%s374] %v383
                  %v385 = vld [vmem:[%s381 + $0x4] sm:%s374]
                  %386 = vst [vmem:[%s382 + $0x1] sm:%s374] %v385
                  %v387 = vld [vmem:[%s381 + $0x8] sm:%s374]
                  %388 = vst [vmem:[%s382 + $0x2] sm:%s374] %v387
                  %v389 = vld [vmem:[%s381 + $0xc] sm:%s374]
                  %390 = vst [vmem:[%s382 + $0x3] sm:%s374] %v389
                  %v391 = vld [vmem:[%s381 + $0x10] sm:%s374]
                  %392 = vst [vmem:[%s382 + $0x4] sm:%s374] %v391
                  %v393 = vld [vmem:[%s381 + $0x14] sm:%s374]
                  %394 = vst [vmem:[%s382 + $0x5] sm:%s374] %v393
                  %v395 = vld [vmem:[%s381 + $0x18] sm:%s374]
                  %396 = vst [vmem:[%s382 + $0x6] sm:%s374] %v395
                  %v397 = vld [vmem:[%s381 + $0x1c] sm:%s374]
                  %398 = vst [vmem:[%s382 + $0x7] sm:%s374] %v397
                $region108: #{patch_expanding_forward.1} parent=95 // loop_footer
                  %s380 = sadd.s32 1, %s376
                $region109: #{patch_expanding_forward.1} parent=95 // loop_footer_branch
                  %375 = sbr.rel target = $region105
                $region110: #{patch_expanding_forward.1} parent=95 // loop_exit
                  _
              $region96: #{patch_expanding_forward.1} parent=80 // pred_fallthru
                _
            $region81: #{patch_expanding_forward.1} parent=76 // pred_fallthru
              _
            // Predicated region
            $region82: #{patch_expanding_forward.1} parent=76 // pred_check
              _
            $region83: #{patch_expanding_forward.1} parent=76 // pred_check_branch
              %336 = sbr.rel (0) target = $region85
            $region84: #{patch_expanding_forward.1} parent=76 // pred_region
              %s338 = ssub.s32 2, 1
              loop: start=0, step=1, limit=1
              $region86: #{patch_expanding_forward.1} parent=84 // loop_pre_header
                _
              $region87: #{patch_expanding_forward.1} parent=84 // loop_header
                %s340 = sphi 0, %s344
                %p341 = scmp.ge.s32.totalorder %s340, 1
                %s345 = sphi %s330, %s330
                %s346 = sphi %s327, %s327
              $region88: #{patch_expanding_forward.1} parent=84 // loop_header_branch
                %343 = sbr.rel (%p341) target = $region92
              $region89: #{patch_expanding_forward.1} parent=84 // loop_body
                %v347 = vld [vmem:[%s345] sm:%s338]
                %348 = vst [vmem:[%s346] sm:%s338] %v347
                %v349 = vld [vmem:[%s345 + $0x4] sm:%s338]
                %350 = vst [vmem:[%s346 + $0x1] sm:%s338] %v349
                %v351 = vld [vmem:[%s345 + $0x8] sm:%s338]
                %352 = vst [vmem:[%s346 + $0x2] sm:%s338] %v351
                %v353 = vld [vmem:[%s345 + $0xc] sm:%s338]
                %354 = vst [vmem:[%s346 + $0x3] sm:%s338] %v353
                %v355 = vld [vmem:[%s345 + $0x10] sm:%s338]
                %356 = vst [vmem:[%s346 + $0x4] sm:%s338] %v355
                %v357 = vld [vmem:[%s345 + $0x14] sm:%s338]
                %358 = vst [vmem:[%s346 + $0x5] sm:%s338] %v357
                %v359 = vld [vmem:[%s345 + $0x18] sm:%s338]
                %360 = vst [vmem:[%s346 + $0x6] sm:%s338] %v359
                %v361 = vld [vmem:[%s345 + $0x1c] sm:%s338]
                %362 = vst [vmem:[%s346 + $0x7] sm:%s338] %v361
              $region90: #{patch_expanding_forward.1} parent=84 // loop_footer
                %s344 = sadd.s32 1, %s340
              $region91: #{patch_expanding_forward.1} parent=84 // loop_footer_branch
                %339 = sbr.rel target = $region87
              $region92: #{patch_expanding_forward.1} parent=84 // loop_exit
                _
            $region85: #{patch_expanding_forward.1} parent=76 // pred_fallthru
              _
          $region77: #{patch_expanding_forward.1} parent=72 // pred_fallthru
            _
          %399 = vnop
        $region73: #{patch_expanding_forward.1} parent=27 // pred_fallthru
          _
        // Predicated region
        $region111: #{patch_expanding_forward.1} parent=27 // pred_check
          %p400 = pneg %p114
        $region112: #{patch_expanding_forward.1} parent=27 // pred_check_branch
          %402 = sbr.rel (%p400) target = $region114
        $region113: #{patch_expanding_forward.1} parent=27 // pred_region
          %s403 = sand.u32 %s104, 1
          %s404 = sand.u32 %s104, 1
          %s405 = smul.addr %s404, 8
          %s406 = scalar_lea.vmem [#allocation4], %s405
          %s407 = sadd.s32 %s20, 1
          %p408 = scmp.lt.s32.totalorder %s407, 3
          %s409 = scalar_select %p408, %s407, 3
          %s410 = smul.addr %s19, 32
          %s411 = sadd.s32 %s409, %s410
          %s412 = scalar_lea.vmem %s2, %s411
          // Predicated region
          $region115: #{patch_expanding_forward.1} parent=113 // pred_check
            _
          $region116: #{patch_expanding_forward.1} parent=113 // pred_check_branch
            %414 = sbr.rel (0) target = $region118
          $region117: #{patch_expanding_forward.1} parent=113 // pred_region
            // Predicated region
            $region119: #{patch_expanding_forward.1} parent=117 // pred_check
              _
            $region120: #{patch_expanding_forward.1} parent=117 // pred_check_branch
              %416 = sbr.rel target = $region122
            $region121: #{patch_expanding_forward.1} parent=117 // pred_region
              // Predicated region
              $region134: #{patch_expanding_forward.1} parent=121 // pred_check
                _
              $region135: #{patch_expanding_forward.1} parent=121 // pred_check_branch
                %446 = sbr.rel (0) target = $region137
              $region136: #{patch_expanding_forward.1} parent=121 // pred_region
                loop: start=0, step=1, limit=1
                $region138: #{patch_expanding_forward.1} parent=136 // loop_pre_header
                  _
                $region139: #{patch_expanding_forward.1} parent=136 // loop_header
                  %s448 = sphi 0, %s452
                  %p449 = scmp.ge.s32.totalorder %s448, 1
                  %s453 = sphi %s412, %s412
                  %s454 = sphi %s406, %s406
                $region140: #{patch_expanding_forward.1} parent=136 // loop_header_branch
                  %451 = sbr.rel (%p449) target = $region144
                $region141: #{patch_expanding_forward.1} parent=136 // loop_body
                  _
                $region142: #{patch_expanding_forward.1} parent=136 // loop_footer
                  %s452 = sadd.s32 1, %s448
                $region143: #{patch_expanding_forward.1} parent=136 // loop_footer_branch
                  %447 = sbr.rel target = $region139
                $region144: #{patch_expanding_forward.1} parent=136 // loop_exit
                  _
                %s456 = ssub.s32 2, 1
                loop: start=0, step=1, limit=1
                $region145: #{patch_expanding_forward.1} parent=136 // loop_pre_header
                  _
                $region146: #{patch_expanding_forward.1} parent=136 // loop_header
                  %s458 = sphi 0, %s462
                  %p459 = scmp.ge.s32.totalorder %s458, 1
                  %s463 = sphi %s412, %s412
                  %s464 = sphi %s406, %s406
                $region147: #{patch_expanding_forward.1} parent=136 // loop_header_branch
                  %461 = sbr.rel (%p459) target = $region151
                $region148: #{patch_expanding_forward.1} parent=136 // loop_body
                  %v465 = vld [vmem:[%s463] sm:%s456]
                  %466 = vst [vmem:[%s464] sm:%s456] %v465
                  %v467 = vld [vmem:[%s463 + $0x4] sm:%s456]
                  %468 = vst [vmem:[%s464 + $0x1] sm:%s456] %v467
                  %v469 = vld [vmem:[%s463 + $0x8] sm:%s456]
                  %470 = vst [vmem:[%s464 + $0x2] sm:%s456] %v469
                  %v471 = vld [vmem:[%s463 + $0xc] sm:%s456]
                  %472 = vst [vmem:[%s464 + $0x3] sm:%s456] %v471
                  %v473 = vld [vmem:[%s463 + $0x10] sm:%s456]
                  %474 = vst [vmem:[%s464 + $0x4] sm:%s456] %v473
                  %v475 = vld [vmem:[%s463 + $0x14] sm:%s456]
                  %476 = vst [vmem:[%s464 + $0x5] sm:%s456] %v475
                  %v477 = vld [vmem:[%s463 + $0x18] sm:%s456]
                  %478 = vst [vmem:[%s464 + $0x6] sm:%s456] %v477
                  %v479 = vld [vmem:[%s463 + $0x1c] sm:%s456]
                  %480 = vst [vmem:[%s464 + $0x7] sm:%s456] %v479
                $region149: #{patch_expanding_forward.1} parent=136 // loop_footer
                  %s462 = sadd.s32 1, %s458
                $region150: #{patch_expanding_forward.1} parent=136 // loop_footer_branch
                  %457 = sbr.rel target = $region146
                $region151: #{patch_expanding_forward.1} parent=136 // loop_exit
                  _
              $region137: #{patch_expanding_forward.1} parent=121 // pred_fallthru
                _
            $region122: #{patch_expanding_forward.1} parent=117 // pred_fallthru
              _
            // Predicated region
            $region123: #{patch_expanding_forward.1} parent=117 // pred_check
              _
            $region124: #{patch_expanding_forward.1} parent=117 // pred_check_branch
              %418 = sbr.rel (0) target = $region126
            $region125: #{patch_expanding_forward.1} parent=117 // pred_region
              %s420 = ssub.s32 2, 1
              loop: start=0, step=1, limit=1
              $region127: #{patch_expanding_forward.1} parent=125 // loop_pre_header
                _
              $region128: #{patch_expanding_forward.1} parent=125 // loop_header
                %s422 = sphi 0, %s426
                %p423 = scmp.ge.s32.totalorder %s422, 1
                %s427 = sphi %s412, %s412
                %s428 = sphi %s406, %s406
              $region129: #{patch_expanding_forward.1} parent=125 // loop_header_branch
                %425 = sbr.rel (%p423) target = $region133
              $region130: #{patch_expanding_forward.1} parent=125 // loop_body
                %v429 = vld [vmem:[%s427] sm:%s420]
                %430 = vst [vmem:[%s428] sm:%s420] %v429
                %v431 = vld [vmem:[%s427 + $0x4] sm:%s420]
                %432 = vst [vmem:[%s428 + $0x1] sm:%s420] %v431
                %v433 = vld [vmem:[%s427 + $0x8] sm:%s420]
                %434 = vst [vmem:[%s428 + $0x2] sm:%s420] %v433
                %v435 = vld [vmem:[%s427 + $0xc] sm:%s420]
                %436 = vst [vmem:[%s428 + $0x3] sm:%s420] %v435
                %v437 = vld [vmem:[%s427 + $0x10] sm:%s420]
                %438 = vst [vmem:[%s428 + $0x4] sm:%s420] %v437
                %v439 = vld [vmem:[%s427 + $0x14] sm:%s420]
                %440 = vst [vmem:[%s428 + $0x5] sm:%s420] %v439
                %v441 = vld [vmem:[%s427 + $0x18] sm:%s420]
                %442 = vst [vmem:[%s428 + $0x6] sm:%s420] %v441
                %v443 = vld [vmem:[%s427 + $0x1c] sm:%s420]
                %444 = vst [vmem:[%s428 + $0x7] sm:%s420] %v443
              $region131: #{patch_expanding_forward.1} parent=125 // loop_footer
                %s426 = sadd.s32 1, %s422
              $region132: #{patch_expanding_forward.1} parent=125 // loop_footer_branch
                %421 = sbr.rel target = $region128
              $region133: #{patch_expanding_forward.1} parent=125 // loop_exit
                _
            $region126: #{patch_expanding_forward.1} parent=117 // pred_fallthru
              _
          $region118: #{patch_expanding_forward.1} parent=113 // pred_fallthru
            _
          %481 = vnop
        $region114: #{patch_expanding_forward.1} parent=27 // pred_fallthru
          _
      $region28: #{patch_expanding_forward.1} parent=5 // pred_fallthru
        _
      %p482 = scmp.le.s32.totalorder 1, %s12
      %p483 = scmp.lt.s32.totalorder %s12, 9
      %p484 = pnand %p482, %p483
      %p485 = pneg %p484
      // Predicated region
      $region152: #{patch_expanding_forward.1} parent=5 // pred_check
        _
      $region153: #{patch_expanding_forward.1} parent=5 // pred_check_branch
        %487 = sbr.rel (%p484) target = $region155
      $region154: #{patch_expanding_forward.1} parent=5 // pred_region
        %s488 = ssub.s32 %s12, 1
        %s489 = sand.u32 %s45, 1
        %s490 = sand.u32 %s45, 1
        %s491 = smul.addr %s490, 8
        %s492 = scalar_lea.vmem [#allocation2], %s491
        // Predicated region
        $region156: #{patch_expanding_forward.1} parent=154 // pred_check
          %p493 = pneg %p58
        $region157: #{patch_expanding_forward.1} parent=154 // pred_check_branch
          %495 = sbr.rel (%p493) target = $region159
        $region158: #{patch_expanding_forward.1} parent=154 // pred_region
          _
        $region159: #{patch_expanding_forward.1} parent=154 // pred_fallthru
          _
        %s496 = sand.u32 %s73, 1
        %s497 = sand.u32 %s73, 1
        %s498 = smul.addr %s497, 8
        %s499 = scalar_lea.vmem [#allocation3], %s498
        // Predicated region
        $region160: #{patch_expanding_forward.1} parent=154 // pred_check
          %p500 = pneg %p86
        $region161: #{patch_expanding_forward.1} parent=154 // pred_check_branch
          %502 = sbr.rel (%p500) target = $region163
        $region162: #{patch_expanding_forward.1} parent=154 // pred_region
          _
        $region163: #{patch_expanding_forward.1} parent=154 // pred_fallthru
          _
        %s503 = sand.u32 %s107, 1
        %s504 = sand.u32 %s107, 1
        %s505 = smul.addr %s504, 8
        %s506 = scalar_lea.vmem [#allocation4], %s505
        // Predicated region
        $region164: #{patch_expanding_forward.1} parent=154 // pred_check
          %p507 = pneg %p120
        $region165: #{patch_expanding_forward.1} parent=154 // pred_check_branch
          %509 = sbr.rel (%p507) target = $region167
        $region166: #{patch_expanding_forward.1} parent=154 // pred_region
          _
        $region167: #{patch_expanding_forward.1} parent=154 // pred_fallthru
          _
        %s510 = sand.u32 %s45, 1
        %s511 = sand.u32 %s45, 1
        %s512 = smul.addr %s511, 8
        %s513 = scalar_lea.vmem [#allocation2], %s512
        %p514 = pneg %p58
        %p515 = pneg %p55
        %s516 = sand.u32 %s73, 1
        %s517 = sand.u32 %s73, 1
        %s518 = smul.addr %s517, 8
        %s519 = scalar_lea.vmem [#allocation3], %s518
        %p520 = pneg %p86
        %p521 = pneg %p83
        %s522 = sand.u32 %s107, 1
        %s523 = sand.u32 %s107, 1
        %s524 = smul.addr %s523, 8
        %s525 = scalar_lea.vmem [#allocation4], %s524
        %p526 = pneg %p120
        %p527 = pneg %p117
        %p528 = pneg %p141
        %p529 = pneg %p138
        %p530 = pneg %p162
        %p531 = pneg %p159
        %p532 = pneg %p183
        %p533 = pneg %p180
        %p534 = pneg %p211
        %p535 = pneg %p208
        %s536 = sand.u32 %s198, 1
        %s537 = sand.u32 %s198, 1
        %s538 = smul.addr %s537, 16
        %s539 = scalar_lea.vmem [#allocation5], %s538
        %s540 = ssub.s32 %s22, 1
        %p541 = scmp.gt.s32.totalorder %s540, 0
        %s542 = scalar_select %p541, %s540, 0
        %s543 = sadd.s32 %s22, 1
        %p544 = scmp.lt.s32.totalorder %s543, 3
        %s545 = scalar_select %p544, %s543, 3
        %v546 = vld [vmem:[%s492] sm:$0x1]
        %v547 = vld [vmem:[%s492 + $0x1] sm:$0x1]
        %v548 = vld [vmem:[%s492 + $0x2] sm:$0x1]
        %v549 = vld [vmem:[%s492 + $0x3] sm:$0x1]
        %v550 = vld [vmem:[%s492 + $0x4] sm:$0x1]
        %v551 = vld [vmem:[%s492 + $0x5] sm:$0x1]
        %v552 = vld [vmem:[%s492 + $0x6] sm:$0x1]
        %v553 = vld [vmem:[%s492 + $0x7] sm:$0x1]
        %v554 = vld [vmem:[%s499] sm:$0x1]
        %v555 = vld [vmem:[%s499 + $0x1] sm:$0x1]
        %v556 = vld [vmem:[%s499 + $0x2] sm:$0x1]
        %v557 = vld [vmem:[%s499 + $0x3] sm:$0x1]
        %v558 = vld [vmem:[%s499 + $0x4] sm:$0x1]
        %v559 = vld [vmem:[%s499 + $0x5] sm:$0x1]
        %v560 = vld [vmem:[%s499 + $0x6] sm:$0x1]
        %v561 = vld [vmem:[%s499 + $0x7] sm:$0x1]
        %v562 = vld [vmem:[%s506] sm:$0x1]
        %v563 = vld [vmem:[%s506 + $0x1] sm:$0x1]
        %v564 = vld [vmem:[%s506 + $0x2] sm:$0x1]
        %v565 = vld [vmem:[%s506 + $0x3] sm:$0x1]
        %v566 = vld [vmem:[%s506 + $0x4] sm:$0x1]
        %v567 = vld [vmem:[%s506 + $0x5] sm:$0x1]
        %v568 = vld [vmem:[%s506 + $0x6] sm:$0x1]
        %v569 = vld [vmem:[%s506 + $0x7] sm:$0x1]
        %v570 = vmul.f32 %v546, 0.25
        %v571 = vmul.f32 %v547, 0.25
        %v572 = vmul.f32 %v548, 0.25
        %v573 = vmul.f32 %v549, 0.25
        %v574 = vmul.f32 %v550, 0.25
        %v575 = vmul.f32 %v551, 0.25
        %v576 = vmul.f32 %v552, 0.25
        %v577 = vmul.f32 %v553, 0.25
        %v578 = vmul.f32 %v554, 0.75
        %v579 = vmul.f32 %v555, 0.75
        %v580 = vmul.f32 %v556, 0.75
        %v581 = vmul.f32 %v557, 0.75
        %v582 = vmul.f32 %v558, 0.75
        %v583 = vmul.f32 %v559, 0.75
        %v584 = vmul.f32 %v560, 0.75
        %v585 = vmul.f32 %v561, 0.75
        %v586 = vadd.f32 %v570, %v578
        %v587 = vadd.f32 %v571, %v579
        %v588 = vadd.f32 %v572, %v580
        %v589 = vadd.f32 %v573, %v581
        %v590 = vadd.f32 %v574, %v582
        %v591 = vadd.f32 %v575, %v583
        %v592 = vadd.f32 %v576, %v584
        %v593 = vadd.f32 %v577, %v585
        %v594 = vmul.f32 %v562, 0.25
        %v595 = vmul.f32 %v563, 0.25
        %v596 = vmul.f32 %v564, 0.25
        %v597 = vmul.f32 %v565, 0.25
        %v598 = vmul.f32 %v566, 0.25
        %v599 = vmul.f32 %v567, 0.25
        %v600 = vmul.f32 %v568, 0.25
        %v601 = vmul.f32 %v569, 0.25
        %v602 = vadd.f32 %v578, %v594
        %v603 = vadd.f32 %v579, %v595
        %v604 = vadd.f32 %v580, %v596
        %v605 = vadd.f32 %v581, %v597
        %v606 = vadd.f32 %v582, %v598
        %v607 = vadd.f32 %v583, %v599
        %v608 = vadd.f32 %v584, %v600
        %v609 = vadd.f32 %v585, %v601
        %v610 = vld [vmem:[%s3] sm:$0xf]
        %619 = vst [vmem:[#allocation1] ss:$9 sm:$0xff] %v586
        %s620 = scalar_lea.vmem [#allocation1], 1
        %621 = vst [vmem:[%s620] ss:$9 sm:$0xff] %v587
        %s622 = scalar_lea.vmem [#allocation1], 2
        %623 = vst [vmem:[%s622] ss:$9 sm:$0xff] %v588
        %s624 = scalar_lea.vmem [#allocation1], 3
        %625 = vst [vmem:[%s624] ss:$9 sm:$0xff] %v589
        %s626 = scalar_lea.vmem [#allocation1], 4
        %627 = vst [vmem:[%s626] ss:$9 sm:$0xff] %v590
        %s628 = scalar_lea.vmem [#allocation1], 5
        %629 = vst [vmem:[%s628] ss:$9 sm:$0xff] %v591
        %s630 = scalar_lea.vmem [#allocation1], 6
        %631 = vst [vmem:[%s630] ss:$9 sm:$0xff] %v592
        %s632 = scalar_lea.vmem [#allocation1], 7
        %633 = vst [vmem:[%s632] ss:$9 sm:$0xff] %v593
        %v634 = vld [vmem:[#allocation1] sm:$0xff]
        %vm636 = vcmask 64512
        %v638 = vsel %vm636, %v610, 0
        %640 = vmatpush.msra.mxu0 0.0
        %641 = vmatpush.msra.mxu0 0.0
        %642 = vmatpush.msra.mxu0 0.0
        %643 = vmatpush.msra.mxu0 0.0
        %644 = vmatpush.msra.mxu0 0.0
        %645 = vmatpush.msra.mxu0 0.0
        %646 = vmatpush.msra.mxu0 0.0
        %647 = vmatpush.msra.mxu0 0.0
        %648 = vmatpush.msra.mxu0 0.0
        %649 = vmatpush.msra.mxu0 0.0
        %650 = vmatpush.msra.mxu0 0.0
        %651 = vmatpush.msra.mxu0 0.0
        %652 = vmatpush.msra.mxu0 0.0
        %653 = vmatpush.msra.mxu0 0.0
        %654 = vmatpush.msra.mxu0 0.0
        %655 = vmatpush.msra.mxu0 %v634
        %656 = vmatmul.f32.gmra.mxu0 %v638
        %v657 = vpop.f32.mrf.mxu0
        %v658 = vadd.f32 0.0, %v657
        %659 = vdwg.mxu0
        %668 = vst [vmem:[#allocation1] ss:$9 sm:$0xff] %v602
        %s669 = scalar_lea.vmem [#allocation1], 1
        %670 = vst [vmem:[%s669] ss:$9 sm:$0xff] %v603
        %s671 = scalar_lea.vmem [#allocation1], 2
        %672 = vst [vmem:[%s671] ss:$9 sm:$0xff] %v604
        %s673 = scalar_lea.vmem [#allocation1], 3
        %674 = vst [vmem:[%s673] ss:$9 sm:$0xff] %v605
        %s675 = scalar_lea.vmem [#allocation1], 4
        %676 = vst [vmem:[%s675] ss:$9 sm:$0xff] %v606
        %s677 = scalar_lea.vmem [#allocation1], 5
        %678 = vst [vmem:[%s677] ss:$9 sm:$0xff] %v607
        %s679 = scalar_lea.vmem [#allocation1], 6
        %680 = vst [vmem:[%s679] ss:$9 sm:$0xff] %v608
        %s681 = scalar_lea.vmem [#allocation1], 7
        %682 = vst [vmem:[%s681] ss:$9 sm:$0xff] %v609
        %v683 = vld [vmem:[#allocation1] sm:$0xff]
        %685 = vmatpush.msra.mxu0 0.0
        %686 = vmatpush.msra.mxu0 0.0
        %687 = vmatpush.msra.mxu0 0.0
        %688 = vmatpush.msra.mxu0 0.0
        %689 = vmatpush.msra.mxu0 0.0
        %690 = vmatpush.msra.mxu0 0.0
        %691 = vmatpush.msra.mxu0 0.0
        %692 = vmatpush.msra.mxu0 0.0
        %693 = vmatpush.msra.mxu0 0.0
        %694 = vmatpush.msra.mxu0 0.0
        %695 = vmatpush.msra.mxu0 0.0
        %696 = vmatpush.msra.mxu0 0.0
        %697 = vmatpush.msra.mxu0 0.0
        %698 = vmatpush.msra.mxu0 0.0
        %699 = vmatpush.msra.mxu0 0.0
        %700 = vmatpush.msra.mxu0 %v683
        %701 = vmatmul.f32.gmra.mxu0 %v638
        %v702 = vpop.f32.mrf.mxu0
        %v703 = vadd.f32 0.0, %v702
        %704 = vdwg.mxu0
        %v705 = vld [vmem:[%s5] sm:$0xff]
        %v706 = vld [vmem:[%s5 + $0x8] sm:$0xff]
        %v707 = vld [vmem:[%s5 + $0x10] sm:$0xff]
        %v708 = vld [vmem:[%s5 + $0x18] sm:$0xff]
        %v709 = vld [vmem:[%s5 + $0x20] sm:$0xff]
        %v710 = vld [vmem:[%s5 + $0x28] sm:$0xff]
        %v711 = vld [vmem:[%s5 + $0x30] sm:$0xff]
        %v712 = vld [vmem:[%s5 + $0x38] sm:$0xff]
        %v713 = vld [vmem:[%s5 + $0x40] sm:$0xff]
        %v714 = vld [vmem:[%s5 + $0x48] sm:$0xff]
        %v715 = vld [vmem:[%s5 + $0x50] sm:$0xff]
        %v716 = vld [vmem:[%s5 + $0x58] sm:$0xff]
        %v717 = vld [vmem:[%s5 + $0x60] sm:$0xff]
        %v718 = vld [vmem:[%s5 + $0x68] sm:$0xff]
        %v719 = vld [vmem:[%s5 + $0x70] sm:$0xff]
        %v720 = vld [vmem:[%s5 + $0x78] sm:$0xff]
        %v721 = vld [vmem:[%s4] sm:$0xf]
        %723 = vset.pattern.permute.xlu0 0
        %724 = vperm.xlu0 %723, %v721
        %v725 = vpop.permute.xlu0 %724
        %vm727 = vcmask 523264
        %v729 = vsel %vm727, %v658, 0
        %731 = vmatpush.msra.mxu0 0.0
        %732 = vmatpush.msra.mxu0 0.0
        %733 = vmatpush.msra.mxu0 0.0
        %734 = vmatpush.msra.mxu0 0.0
        %735 = vmatpush.msra.mxu0 0.0
        %736 = vmatpush.msra.mxu0 0.0
        %737 = vmatpush.msra.mxu0 0.0
        %738 = vmatpush.msra.mxu0 0.0
        %739 = vmatpush.msra.mxu0 %v719
        %740 = vmatpush.msra.mxu0 %v717
        %741 = vmatpush.msra.mxu0 %v715
        %742 = vmatpush.msra.mxu0 %v713
        %743 = vmatpush.msra.mxu0 %v711
        %744 = vmatpush.msra.mxu0 %v709
        %745 = vmatpush.msra.mxu0 %v707
        %746 = vmatpush.msra.mxu0 %v705
        %747 = vmatmul.f32.gmra.mxu0 %v729
        %v748 = vpop.f32.mrf.mxu0
        %v749 = vadd.f32 %v725, %v748
        %750 = vdwg.mxu0
        %751 = vmatpush.msra.mxu0 0.0
        %752 = vmatpush.msra.mxu0 0.0
        %753 = vmatpush.msra.mxu0 0.0
        %754 = vmatpush.msra.mxu0 0.0
        %755 = vmatpush.msra.mxu0 0.0
        %756 = vmatpush.msra.mxu0 0.0
        %757 = vmatpush.msra.mxu0 0.0
        %758 = vmatpush.msra.mxu0 0.0
        %759 = vmatpush.msra.mxu0 %v720
        %760 = vmatpush.msra.mxu0 %v718
        %761 = vmatpush.msra.mxu0 %v716
        %762 = vmatpush.msra.mxu0 %v714
        %763 = vmatpush.msra.mxu0 %v712
        %764 = vmatpush.msra.mxu0 %v710
        %765 = vmatpush.msra.mxu0 %v708
        %766 = vmatpush.msra.mxu0 %v706
        %767 = vmatmul.f32.gmra.mxu0 %v729
        %v768 = vpop.f32.mrf.mxu0
        %v769 = vadd.f32 %v725, %v768
        %770 = vdwg.mxu0
        %v772 = vsel %vm727, %v703, 0
        %774 = vmatpush.msra.mxu0 0.0
        %775 = vmatpush.msra.mxu0 0.0
        %776 = vmatpush.msra.mxu0 0.0
        %777 = vmatpush.msra.mxu0 0.0
        %778 = vmatpush.msra.mxu0 0.0
        %779 = vmatpush.msra.mxu0 0.0
        %780 = vmatpush.msra.mxu0 0.0
        %781 = vmatpush.msra.mxu0 0.0
        %782 = vmatpush.msra.mxu0 %v719
        %783 = vmatpush.msra.mxu0 %v717
        %784 = vmatpush.msra.mxu0 %v715
        %785 = vmatpush.msra.mxu0 %v713
        %786 = vmatpush.msra.mxu0 %v711
        %787 = vmatpush.msra.mxu0 %v709
        %788 = vmatpush.msra.mxu0 %v707
        %789 = vmatpush.msra.mxu0 %v705
        %790 = vmatmul.f32.gmra.mxu0 %v772
        %v791 = vpop.f32.mrf.mxu0
        %v792 = vadd.f32 %v725, %v791
        %793 = vdwg.mxu0
        %794 = vmatpush.msra.mxu0 0.0
        %795 = vmatpush.msra.mxu0 0.0
        %796 = vmatpush.msra.mxu0 0.0
        %797 = vmatpush.msra.mxu0 0.0
        %798 = vmatpush.msra.mxu0 0.0
        %799 = vmatpush.msra.mxu0 0.0
        %800 = vmatpush.msra.mxu0 0.0
        %801 = vmatpush.msra.mxu0 0.0
        %802 = vmatpush.msra.mxu0 %v720
        %803 = vmatpush.msra.mxu0 %v718
        %804 = vmatpush.msra.mxu0 %v716
        %805 = vmatpush.msra.mxu0 %v714
        %806 = vmatpush.msra.mxu0 %v712
        %807 = vmatpush.msra.mxu0 %v710
        %808 = vmatpush.msra.mxu0 %v708
        %809 = vmatpush.msra.mxu0 %v706
        %810 = vmatmul.f32.gmra.mxu0 %v772
        %v811 = vpop.f32.mrf.mxu0
        %v812 = vadd.f32 %v725, %v811
        %813 = vdwg.mxu0
        %v816 = vrot.slane %v769, 7
        %vm817 = vcmask 1040384
        %v818 = vsel %vm817, %v749, %v816
        %vm819 = vcmask 1041409
        %v820 = vsel %vm819, %v749, %v816
        %v821 = vrot.slane %v820, 1
        %vm822 = vcmask 1042434
        %v823 = vsel %vm822, %v749, %v816
        %v824 = vrot.slane %v823, 2
        %vm825 = vcmask 1043459
        %v826 = vsel %vm825, %v749, %v816
        %v827 = vrot.slane %v826, 3
        %v832 = vlaneseq
        %vm833 = vcmp.ge.s32.totalorder %v832, 0
        %vm834 = vcmp.lt.s32.totalorder %v832, 256
        %vm835 = vmand %vm833, %vm834
        %836 = vst.msk [vmem:[%s539] ss:$2 sm:$0x3] %vm835, %v818
        %s837 = scalar_lea.vmem %s539, 4 [#allocation5]
        %838 = vst.msk [vmem:[%s837] ss:$2 sm:$0x3] %vm835, %v821
        %s839 = scalar_lea.vmem %s539, 8 [#allocation5]
        %840 = vst.msk [vmem:[%s839] ss:$2 sm:$0x3] %vm835, %v824
        %s841 = scalar_lea.vmem %s539, 12 [#allocation5]
        %842 = vst.msk [vmem:[%s841] ss:$2 sm:$0x3] %vm835, %v827
        %v845 = vrot.slane %v812, 7
        %v846 = vsel %vm817, %v792, %v845
        %v847 = vsel %vm819, %v792, %v845
        %v848 = vrot.slane %v847, 1
        %v849 = vsel %vm822, %v792, %v845
        %v850 = vrot.slane %v849, 2
        %v851 = vsel %vm825, %v792, %v845
        %v852 = vrot.slane %v851, 3
        %s857 = scalar_lea.vmem %s539, 1 [#allocation5]
        %858 = vst.msk [vmem:[%s857] ss:$2 sm:$0x3] %vm835, %v846
        %s859 = scalar_lea.vmem %s539, 5 [#allocation5]
        %860 = vst.msk [vmem:[%s859] ss:$2 sm:$0x3] %vm835, %v848
        %s861 = scalar_lea.vmem %s539, 9 [#allocation5]
        %862 = vst.msk [vmem:[%s861] ss:$2 sm:$0x3] %vm835, %v850
        %s863 = scalar_lea.vmem %s539, 13 [#allocation5]
        %864 = vst.msk [vmem:[%s863] ss:$2 sm:$0x3] %vm835, %v852
        %s865 = sand.u32 %s198, 1
        %s866 = sand.u32 %s198, 1
        %s867 = smul.addr %s866, 16
        %s868 = scalar_lea.vmem [#allocation5], %s867
        // Predicated region
        $region168: #{patch_expanding_forward.1} parent=154 // pred_check
          %p869 = pneg %p208
        $region169: #{patch_expanding_forward.1} parent=154 // pred_check_branch
          %871 = sbr.rel (%p869) target = $region171
        $region170: #{patch_expanding_forward.1} parent=154 // pred_region
          %s872 = smul.addr %s22, 2
          %s873 = smul.addr %s21, 32
          %s874 = sadd.s32 %s872, %s873
          %s875 = smul.addr %s874, 2
          %s876 = scalar_lea.vmem %s6, %s875
          // Predicated region
          $region172: #{patch_expanding_forward.1} parent=170 // pred_check
            _
          $region173: #{patch_expanding_forward.1} parent=170 // pred_check_branch
            %878 = sbr.rel (0) target = $region175
          $region174: #{patch_expanding_forward.1} parent=170 // pred_region
            // Predicated region
            $region176: #{patch_expanding_forward.1} parent=174 // pred_check
              _
            $region177: #{patch_expanding_forward.1} parent=174 // pred_check_branch
              %880 = sbr.rel target = $region179
            $region178: #{patch_expanding_forward.1} parent=174 // pred_region
              // Predicated region
              $region191: #{patch_expanding_forward.1} parent=178 // pred_check
                _
              $region192: #{patch_expanding_forward.1} parent=178 // pred_check_branch
                %902 = sbr.rel (0) target = $region194
              $region193: #{patch_expanding_forward.1} parent=178 // pred_region
                loop: start=0, step=1, limit=1
                $region195: #{patch_expanding_forward.1} parent=193 // loop_pre_header
                  _
                $region196: #{patch_expanding_forward.1} parent=193 // loop_header
                  %s904 = sphi 0, %s908
                  %p905 = scmp.ge.s32.totalorder %s904, 1
                  %s909 = sphi %s868, %s868
                  %s910 = sphi %s876, %s876
                $region197: #{patch_expanding_forward.1} parent=193 // loop_header_branch
                  %907 = sbr.rel (%p905) target = $region201
                $region198: #{patch_expanding_forward.1} parent=193 // loop_body
                  _
                $region199: #{patch_expanding_forward.1} parent=193 // loop_footer
                  %s908 = sadd.s32 1, %s904
                $region200: #{patch_expanding_forward.1} parent=193 // loop_footer_branch
                  %903 = sbr.rel target = $region196
                $region201: #{patch_expanding_forward.1} parent=193 // loop_exit
                  _
                %s912 = ssub.s32 16, 1
                loop: start=0, step=1, limit=1
                $region202: #{patch_expanding_forward.1} parent=193 // loop_pre_header
                  _
                $region203: #{patch_expanding_forward.1} parent=193 // loop_header
                  %s914 = sphi 0, %s918
                  %p915 = scmp.ge.s32.totalorder %s914, 1
                  %s919 = sphi %s868, %s868
                  %s920 = sphi %s876, %s876
                $region204: #{patch_expanding_forward.1} parent=193 // loop_header_branch
                  %917 = sbr.rel (%p915) target = $region208
                $region205: #{patch_expanding_forward.1} parent=193 // loop_body
                  %v921 = vld [vmem:[%s919] sm:%s912]
                  %922 = vst [vmem:[%s920] sm:%s912] %v921
                  %v923 = vld [vmem:[%s919 + $0x4] sm:%s912]
                  %924 = vst [vmem:[%s920 + $0x10] sm:%s912] %v923
                  %v925 = vld [vmem:[%s919 + $0x8] sm:%s912]
                  %926 = vst [vmem:[%s920 + $0x20] sm:%s912] %v925
                  %v927 = vld [vmem:[%s919 + $0xc] sm:%s912]
                  %928 = vst [vmem:[%s920 + $0x30] sm:%s912] %v927
                $region206: #{patch_expanding_forward.1} parent=193 // loop_footer
                  %s918 = sadd.s32 1, %s914
                $region207: #{patch_expanding_forward.1} parent=193 // loop_footer_branch
                  %913 = sbr.rel target = $region203
                $region208: #{patch_expanding_forward.1} parent=193 // loop_exit
                  _
              $region194: #{patch_expanding_forward.1} parent=178 // pred_fallthru
                _
            $region179: #{patch_expanding_forward.1} parent=174 // pred_fallthru
              _
            // Predicated region
            $region180: #{patch_expanding_forward.1} parent=174 // pred_check
              _
            $region181: #{patch_expanding_forward.1} parent=174 // pred_check_branch
              %882 = sbr.rel (0) target = $region183
            $region182: #{patch_expanding_forward.1} parent=174 // pred_region
              %s884 = ssub.s32 16, 1
              loop: start=0, step=1, limit=1
              $region184: #{patch_expanding_forward.1} parent=182 // loop_pre_header
                _
              $region185: #{patch_expanding_forward.1} parent=182 // loop_header
                %s886 = sphi 0, %s890
                %p887 = scmp.ge.s32.totalorder %s886, 1
                %s891 = sphi %s868, %s868
                %s892 = sphi %s876, %s876
              $region186: #{patch_expanding_forward.1} parent=182 // loop_header_branch
                %889 = sbr.rel (%p887) target = $region190
              $region187: #{patch_expanding_forward.1} parent=182 // loop_body
                %v893 = vld [vmem:[%s891] sm:%s884]
                %894 = vst [vmem:[%s892] sm:%s884] %v893
                %v895 = vld [vmem:[%s891 + $0x4] sm:%s884]
                %896 = vst [vmem:[%s892 + $0x10] sm:%s884] %v895
                %v897 = vld [vmem:[%s891 + $0x8] sm:%s884]
                %898 = vst [vmem:[%s892 + $0x20] sm:%s884] %v897
                %v899 = vld [vmem:[%s891 + $0xc] sm:%s884]
                %900 = vst [vmem:[%s892 + $0x30] sm:%s884] %v899
              $region188: #{patch_expanding_forward.1} parent=182 // loop_footer
                %s890 = sadd.s32 1, %s886
              $region189: #{patch_expanding_forward.1} parent=182 // loop_footer_branch
                %885 = sbr.rel target = $region185
              $region190: #{patch_expanding_forward.1} parent=182 // loop_exit
                _
            $region183: #{patch_expanding_forward.1} parent=174 // pred_fallthru
              _
          $region175: #{patch_expanding_forward.1} parent=170 // pred_fallthru
            _
          %929 = vnop
        $region171: #{patch_expanding_forward.1} parent=154 // pred_fallthru
          _
      $region155: #{patch_expanding_forward.1} parent=5 // pred_fallthru
        _
      %p930 = scmp.le.s32.totalorder 2, %s12
      // Predicated region
      $region209: #{patch_expanding_forward.1} parent=5 // pred_check
        %p931 = pneg %p930
      $region210: #{patch_expanding_forward.1} parent=5 // pred_check_branch
        %933 = sbr.rel (%p931) target = $region212
      $region211: #{patch_expanding_forward.1} parent=5 // pred_region
        %s934 = ssub.s32 %s12, 2
        // Predicated region
        $region213: #{patch_expanding_forward.1} parent=211 // pred_check
          %p935 = pneg %p214
        $region214: #{patch_expanding_forward.1} parent=211 // pred_check_branch
          %937 = sbr.rel (%p935) target = $region216
        $region215: #{patch_expanding_forward.1} parent=211 // pred_region
          %s938 = sand.u32 %s199, 1
          %s939 = sand.u32 %s199, 1
          %s940 = smul.addr %s939, 16
          %s941 = scalar_lea.vmem [#allocation5], %s940
        $region216: #{patch_expanding_forward.1} parent=211 // pred_fallthru
          _
      $region212: #{patch_expanding_forward.1} parent=5 // pred_fallthru
        _
    $region6: #{patch_expanding_forward.1} parent=1 // loop_footer
      %s16 = sadd.s32 1, %s12
    $region7: #{patch_expanding_forward.1} parent=1 // loop_footer_branch
      %11 = sbr.rel target = $region3
    $region8: #{patch_expanding_forward.1} parent=1 // loop_exit
      _

</llo_original>
